<compile_context>
chip_gen: v7x
topology: tpu7x:2x2x1
jax: 0.10.0
libtpu: 0.0.40
codegen_flags: <defaults>
</compile_context>

<pallas_src>
import jax
import jax.numpy as jnp
from jax.experimental import pallas as pl
from jax.experimental.pallas import tpu as pltpu


def _cdiv(a, b):
    return -(-a // b)


def _round_up(a, m):
    return _cdiv(a, m) * m


def _num_parallel_cores():
    """2 on chips where one Pallas call spans two TensorCores, else 1."""
    try:
        kind = jax.devices()[0].device_kind.lower().replace(" ", "").replace("-", "")
    except Exception:
        return 1
    if any(tag in kind for tag in ("v4", "v5p", "7x", "v7")):
        return 2
    return 1


def _make_kernel(w, dlen):
    def kernel(x_ref, o_ref):
        # grid = (cores, steps); axis 1 is the reduction axis over NC slabs.
        step = pl.program_id(1)

        @pl.when(step == 0)
        def _():
            o_ref[...] = jnp.zeros_like(o_ref)

        x = x_ref[...].astype(jnp.float32)            # (block_nc, H*W), lane-dense
        # Vertical neighbour diff = lane-offset subtract within each row.
        # x[:, :dlen] is an aligned prefix (cheap); x[:, w:w+dlen] is the single
        # lane-shifted operand.
        d = x[:, :dlen] - x[:, w:w + dlen]
        ad = jnp.abs(d)
        m = jnp.minimum(ad, 1.0)
        sl1 = m * (ad - 0.5 * m)                      # smooth L1 (beta=1) vs zero
        # Per-lane partial sums: reduce only the leading block_nc axis; full
        # reduce + mean happen once in the wrapper (better f32 accumulation).
        o_ref[...] += jnp.sum(sl1, axis=0, keepdims=True)

    return kernel


def parsing_relation_loss(logits, *, target_block_bytes=4 * 1024 * 1024):
    """ParsingRelationLoss forward. logits: (N, C, H, W). Returns scalar f32."""
    n, c, h, w = logits.shape
    if h < 2:
        raise ValueError("ParsingRelationLoss needs H >= 2")
    nc = n * c
    hw = h * w
    dlen = (h - 1) * w
    denom = nc * dlen                      # true element count of the diffs

    x = logits.reshape(nc, hw)             # contiguous -> free bitcast
    itemsize = int(jnp.dtype(x.dtype).itemsize)
    lane_w = _round_up(hw, 128)            # lane-padded width of the VMEM block

    cores = _num_parallel_cores()
    if nc < cores * 8:                     # too small to split across cores
        cores = 1

    # ---- chip-aware VMEM budget --------------------------------------------
    try:
        vmem_cap = int(pltpu.get_tpu_info().vmem_capacity_bytes)
    except Exception:
        vmem_cap = 64 * 1024 * 1024        # conservative: v7x per-TC size
    vmem_budget = (vmem_cap * 3) // 4

    # ---- block sizing (dtype-aware, streaming/HBM-bound) --------------------
    in_row = lane_w * itemsize             # input-dtype bytes per NC row in VMEM
    f32_row = lane_w * 4
    per_row = 2 * in_row + 4 * f32_row     # dbl-buffered input + f32 temporaries

    block_nc = max(8, (target_block_bytes // in_row) // 8 * 8)
    block_nc = min(block_nc, max(8, (vmem_budget // per_row) // 8 * 8))
    per_core = _round_up(_cdiv(nc, cores), 8)
    block_nc = min(block_nc, max(8, per_core))

    steps = _cdiv(nc, cores * block_nc)
    total = cores * block_nc * steps
    if total != nc:
        # Zero rows contribute exactly 0 to the smooth-L1 sum; the mean divisor
        # uses the true element count, so zero-padding is correctness-neutral.
        x = jnp.pad(x, ((0, total - nc), (0, 0)))

    vmem_limit = int(min(max(block_nc * per_row + (2 << 20), 32 * 1024 * 1024),
                         vmem_budget))

    partials = pl.pallas_call(
        _make_kernel(w, dlen),
        out_shape=jax.ShapeDtypeStruct((cores, dlen), jnp.float32),
        grid=(cores, steps),
        in_specs=[
            pl.BlockSpec((block_nc, hw), lambda p, j: (p * steps + j, 0)),
        ],
        # Output index map ignores the reduction axis -> the output block itself
        # is the resident per-core accumulator (no VMEM scratch needed).
        out_specs=pl.BlockSpec((1, dlen), lambda p, j: (p, 0)),
        compiler_params=pltpu.CompilerParams(
            dimension_semantics=("parallel", "arbitrary"),
            vmem_limit_bytes=vmem_limit,
        ),
    )(x)

    return jnp.sum(partials) * (1.0 / float(denom))


def _reference_loss(logits):
    # pure-JAX reference of the PyTorch forward
    d = logits[:, :, :-1, :] - logits[:, :, 1:, :]
    ad = jnp.abs(d)
    sl1 = jnp.where(ad < 1.0, 0.5 * d * d, ad - 0.5)
    return jnp.mean(sl1)


if __name__ == "__main__":
    key = jax.random.PRNGKey(0)
    k1, k2 = jax.random.split(key)

    # Primary check: small NCHW, f32, single block.
    N, C, H, W = 2, 4, 16, 16
    logits = jax.random.normal(k1, (N, C, H, W), dtype=jnp.float32) * 2.0
    loss = jax.block_until_ready(parsing_relation_loss(logits))
    ref = jax.block_until_ready(_reference_loss(logits))
    assert jnp.allclose(loss, ref, rtol=1e-5, atol=1e-6), (loss, ref)

    # Secondary check: bf16 input, NC not a multiple of the block, and a tiny
    # target block size to force several reduction steps + NC zero-padding.
    N2, C2, H2, W2 = 3, 40, 16, 16
    logits2 = (jax.random.normal(k2, (N2, C2, H2, W2), dtype=jnp.float32) * 2.0
               ).astype(jnp.bfloat16)
    loss2 = jax.block_until_ready(
        parsing_relation_loss(logits2, target_block_bytes=16 * 1024))
    ref2 = jax.block_until_ready(_reference_loss(logits2.astype(jnp.float32)))
    assert jnp.allclose(loss2, ref2, rtol=1e-4, atol=1e-5), (loss2, ref2)

    print("KERNEL_OK")
</pallas_src>

<mosaic_0001>
module attributes {stable_mosaic.version = 11 : i64} {
  func.func @kernel(%arg0: i32, %arg1: i32, %arg2: memref<8x256xf32, #tpu.memory_space<vmem>>, %arg3: memref<1x240xf32, #tpu.memory_space<vmem>>) attributes {dimension_semantics = [#tpu.dimension_semantics<parallel>, #tpu.dimension_semantics<arbitrary>], iteration_bounds = array<i64: 1, 1>, scalar_prefetch = 0 : i64, scratch_operands = 0 : i64, tpu.core_type = #tpu.core_type<tc>, window_params = [{transform_indices = @transform_0, window_bounds = array<i64: 8, 256>}, {transform_indices = @transform_1, window_bounds = array<i64: 1, 240>}]} {
    %c0_i32 = arith.constant 0 : i32
    %0 = arith.cmpi eq, %arg1, %c0_i32 : i32
    %1 = arith.extui %0 : i1 to i32
    %c0_i32_0 = arith.constant 0 : i32
    %2 = arith.cmpi ne, %1, %c0_i32_0 : i32
    scf.if %2 {
      %cst_8 = arith.constant 0.000000e+00 : f32
      %19 = vector.broadcast %cst_8 : f32 to vector<1x240xf32>
      %c0_9 = arith.constant 0 : index
      %c0_10 = arith.constant 0 : index
      %20 = vector.load %arg3[%c0_9, %c0_10] : memref<1x240xf32, #tpu.memory_space<vmem>>, vector<1x240xf32>
      tpu.vector_store %arg3[%c0_9, %c0_10], %19 {strides = array<i32>} : memref<1x240xf32, #tpu.memory_space<vmem>>, vector<1x240xf32>,
    } else {
    }
    %c0 = arith.constant 0 : index
    %c0_1 = arith.constant 0 : index
    %3 = vector.load %arg2[%c0, %c0_1] : memref<8x256xf32, #tpu.memory_space<vmem>>, vector<8x256xf32>
    %4 = vector.extract_strided_slice %3 {offsets = [0, 0], sizes = [8, 240], strides = [1, 1]} : vector<8x256xf32> to vector<8x240xf32>
    %5 = vector.extract_strided_slice %3 {offsets = [0, 16], sizes = [8, 240], strides = [1, 1]} : vector<8x256xf32> to vector<8x240xf32>
    %6 = arith.subf %4, %5 : vector<8x240xf32>
    %7 = math.absf %6 : vector<8x240xf32>
    %cst = arith.constant 1.000000e+00 : f32
    %8 = vector.broadcast %cst : f32 to vector<8x240xf32>
    %9 = arith.minimumf %7, %8 : vector<8x240xf32>
    %cst_2 = arith.constant 5.000000e-01 : f32
    %10 = vector.broadcast %cst_2 : f32 to vector<8x240xf32>
    %11 = arith.mulf %10, %9 : vector<8x240xf32>
    %12 = arith.subf %7, %11 : vector<8x240xf32>
    %13 = arith.mulf %9, %12 : vector<8x240xf32>
    %c0_3 = arith.constant 0 : index
    %c0_4 = arith.constant 0 : index
    %14 = vector.load %arg3[%c0_3, %c0_4] : memref<1x240xf32, #tpu.memory_space<vmem>>, vector<1x240xf32>
    %cst_5 = arith.constant dense<0.000000e+00> : vector<240xf32>
    %15 = vector.multi_reduction <add>, %13, %cst_5 [0] : vector<8x240xf32> to vector<240xf32>
    %16 = vector.shape_cast %15 : vector<240xf32> to vector<1x240xf32>
    %17 = arith.addf %14, %16 : vector<1x240xf32>
    %c0_6 = arith.constant 0 : index
    %c0_7 = arith.constant 0 : index
    %18 = vector.load %arg3[%c0_6, %c0_7] : memref<1x240xf32, #tpu.memory_space<vmem>>, vector<1x240xf32>
    tpu.vector_store %arg3[%c0_6, %c0_7], %17 {strides = array<i32>} : memref<1x240xf32, #tpu.memory_space<vmem>>, vector<1x240xf32>,
    return
  }
  func.func @transform_0(%arg0: i32, %arg1: i32) -> (i32, i32) {
    %c1_i32 = arith.constant 1 : i32
    %0 = arith.muli %arg0, %c1_i32 : i32
    %1 = arith.addi %0, %arg1 : i32
    %c0_i32 = arith.constant 0 : i32
    %c0_i32_0 = arith.constant 0 : i32
    return %1, %c0_i32 : i32, i32
  }
  func.func @transform_1(%arg0: i32, %arg1: i32) -> (i32, i32) {
    %c0_i32 = arith.constant 0 : i32
    %c0_i32_0 = arith.constant 0 : i32
    return %arg0, %c0_i32 : i32, i32
  }
}

</mosaic_0001>

<llo_original>
// kernel: tpu_custom_call.1
$region0: #{tpu_custom_call.1}
  #allocation0 [shape = 'u32[]', space=smem, size = 0x4, offset = 0x4, fixed_abs, tag = 'smem constant byte address 0x4 - core index']
  #allocation1 [shape = 'u32[144,128]{1,0:T(1,128)}', space=vmem, size = 0x12000, scoped, tag = 'internal scratch']
  %s0 = inlined_call_operand.hbm [shape: f32[8,256], index: 0, kind: input, shape index: {}]
  %s1 = inlined_call_operand.hbm [shape: f32[1,240], index: 1, kind: output, shape index: {}]
  %s2 = sld [smem:[#allocation0]]
  $region22: #{tpu_custom_call.1} parent=0
    _
  %s4 = ssub.s32 1, %s2
  %s5 = scalar_select 0, %s4, %s2
  $region1: #{tpu_custom_call.1} parent=0
    #allocation2 [shape = 'u8[8192]{0}', space=vmem, size = 0x2000, scoped, tag = 'input window, operand 0, single buffered']
    #allocation3 [shape = 's32[1]{0}', space=sflag, size = 0x4, scoped, tag = 'scoped memory for tpu_custom_call.1']
    #allocation4 [shape = 's32[1]{0}', space=sflag, size = 0x4, scoped, tag = 'scoped memory for tpu_custom_call.1']
    #allocation5 [shape = 'u8[1024]{0}', space=vmem, size = 0x400, scoped, tag = 'output window, operand 0, single buffered']
    %6 = vsyncpa [#allocation3], 0
    %7 = vsyncpa [#allocation4], 0
    // Predicated region
    $region2: #{tpu_custom_call.1} parent=1 // pred_check
      _
    $region3: #{tpu_custom_call.1} parent=1 // pred_check_branch
      %9 = sbr.rel (0) target = $region5
    $region4: #{tpu_custom_call.1} parent=1 // pred_region
      %s10 = sadd.s32 0, 0
      %s12 = ssub.s32 256, 256
      %13 = vsyncadd [#allocation3], %s12
      %s14 = smul.addr %s10, 2
      %s15 = smul.addr %s14, 128
      %s16 = scalar_lea.hbm %s0, %s15
      %s18 = sshll.u32 [#allocation2], 4
      %s19 = int_to_ptr.vmem [resolvable:$true] %s18
      %21 = dma.hbm_to_vmem [thread:$0]  %s16, 256, %s19, [#allocation3]
    $region5: #{tpu_custom_call.1} parent=1 // pred_fallthru
      _
    // Predicated region
    $region6: #{tpu_custom_call.1} parent=1 // pred_check
      _
    $region7: #{tpu_custom_call.1} parent=1 // pred_check_branch
      %23 = sbr.rel (0) target = $region9
    $region8: #{tpu_custom_call.1} parent=1 // pred_region
      %24 = dma.done [#allocation3], 256
    $region9: #{tpu_custom_call.1} parent=1 // pred_fallthru
      _
    %s25 = sadd.s32 0, 0
    %p26 = scmp.eq.s32.totalorder 0, 0
    // Predicated region
    $region10: #{tpu_custom_call.1} parent=1 // pred_check
      %p27 = pneg %p26
    $region11: #{tpu_custom_call.1} parent=1 // pred_check_branch
      %29 = sbr.rel (%p27) target = $region13
    $region12: #{tpu_custom_call.1} parent=1 // pred_region
      %v30 = vlaneseq
      %vm31 = vcmp.ge.s32.totalorder %v30, 0
      %vm32 = vcmp.lt.s32.totalorder %v30, 240
      %vm33 = vmand %vm31, %vm32
      %34 = vst.msk [vmem:[#allocation5] sm:$0x3] %vm33, 0.0
    $region13: #{tpu_custom_call.1} parent=1 // pred_fallthru
      _
    %v35 = vld [vmem:[#allocation2] sm:$0xff]
    %v36 = vld [vmem:[#allocation2 + $0x8] sm:$0xff]
    %39 = vrot.lane.b32.xlu0 %v35, 112
    %v40 = vpop.permute.xlu0 %39
    %41 = vrot.lane.b32.xlu0 %v36, 112
    %v42 = vpop.permute.xlu0 %41
    %vm43 = vcmask 916480
    %v44 = vsel %vm43, %v40, %v42
    %v47 = vsub.f32 %v35, %v44
    %v48 = vsub.f32 %v36, %v42
    %v49 = vand.u32 2147483647, %v47
    %v50 = vand.u32 2147483647, %v48
    %v51 = vmin.f32 %v49, 1.0
    %v52 = vmin.f32 %v50, 1.0
    %v53 = vmul.f32 %v51, 0.5
    %v54 = vmul.f32 %v52, 0.5
    %v55 = vsub.f32 %v49, %v53
    %v56 = vsub.f32 %v50, %v54
    %v57 = vmul.f32 %v51, %v55
    %v58 = vmul.f32 %v52, %v56
    %v59 = vld [vmem:[#allocation5] sm:$0x3]
    %v60 = vrot.slane %v57, 4
    %v61 = vadd.f32 %v57, %v60
    %v62 = vrot.slane %v61, 2
    %v63 = vadd.f32 %v61, %v62
    %v64 = vrot.slane %v63, 1
    %v65 = vadd.f32 %v63, %v64
    %v66 = vsel %vm43, %v58, 0.0
    %v67 = vrot.slane %v66, 4
    %v68 = vadd.f32 %v66, %v67
    %v69 = vrot.slane %v68, 2
    %v70 = vadd.f32 %v68, %v69
    %v71 = vrot.slane %v70, 1
    %v72 = vadd.f32 %v70, %v71
    %v75 = vcombine.low %v65, %v72
    %v77 = vunpack.c.l.s4 1966171168
    %v78 = vunpack.c.0.s8 %v77
    %v79 = vlaneseq
    %v80 = vshrl.u32 %v79, 7
    %v81 = vsub.s32 %v78, %v80
    %v82 = vrot.slane %v75, %v81
    %v84 = vunpack.c.l.s4 1966171168
    %v85 = vunpack.c.0.s8 %v84
    %v86 = vlaneseq
    %v87 = vshrl.u32 %v86, 7
    %v88 = vsub.s32 %v85, %v87
    %v89 = vrot.slane %v82, %v88
    %v91 = vadd.f32 %v59, %v89
    %v92 = vlaneseq
    %vm93 = vcmp.ge.s32.totalorder %v92, 0
    %vm94 = vcmp.lt.s32.totalorder %v92, 240
    %vm95 = vmand %vm93, %vm94
    %96 = vst.msk [vmem:[#allocation5] sm:$0x3] %vm95, %v91
    // Predicated region
    $region14: #{tpu_custom_call.1} parent=1 // pred_check
      _
    $region15: #{tpu_custom_call.1} parent=1 // pred_check_branch
      %98 = sbr.rel (0) target = $region17
    $region16: #{tpu_custom_call.1} parent=1 // pred_region
      %s100 = ssub.s32 32, 32
      %101 = vsyncadd [#allocation4], %s100
      %s103 = sshll.u32 [#allocation5], 4
      %s104 = int_to_ptr.vmem [resolvable:$true] %s103
      %106 = dma.vmem_to_hbm [thread:$0]  %s104, 32, %s1, [#allocation4]
    $region17: #{tpu_custom_call.1} parent=1 // pred_fallthru
      _
    // Predicated region
    $region18: #{tpu_custom_call.1} parent=1 // pred_check
      _
    $region19: #{tpu_custom_call.1} parent=1 // pred_check_branch
      %108 = sbr.rel (0) target = $region21
    $region20: #{tpu_custom_call.1} parent=1 // pred_region
      %109 = dma.done [#allocation4], 32
    $region21: #{tpu_custom_call.1} parent=1 // pred_fallthru
      _
    %110 = vsyncpa [#allocation3], 1
    %111 = vsyncpa [#allocation4], 1

</llo_original>
